<compile_context>
chip_gen: v5e
topology: v5e:2x2
jax: 0.10.0
libtpu: 0.0.40
codegen_flags: <defaults>
</compile_context>

<pallas_src>
import functools

import jax
import jax.numpy as jnp
from jax.experimental import pallas as pl
from jax.experimental.pallas import tpu as pltpu


def _distill_loss_kernel(s_ref, t_ref, sat_ref, out_ref,
                         m_s, m_t, ssum, tsum, cross, z, *,
                         temperature, alpha, batch, block_rows, inner_steps):
    g = pl.program_id(0)            # megacore split ("parallel")
    i = pl.program_id(1)            # batch-tile reduction axis ("arbitrary")
    j = pl.program_id(2)            # class-chunk axis ("arbitrary")
    n_chunks = pl.num_programs(2)

    f32 = jnp.float32
    temp = f32(temperature)
    inv_temp = f32(1.0 / temperature)
    is_t2 = float(temperature) == 2.0

    @pl.when((i == 0) & (j == 0))
    def _():
        out_ref[...] = jnp.zeros_like(out_ref)

    @pl.when(j == 0)
    def _():
        m_s[...] = jnp.full_like(m_s, -jnp.inf)
        m_t[...] = jnp.full_like(m_t, -jnp.inf)
        ssum[...] = jnp.zeros_like(ssum)
        tsum[...] = jnp.zeros_like(tsum)
        cross[...] = jnp.zeros_like(cross)
        z[...] = jnp.zeros_like(z)

    # ---- online (flash-style) accumulation over the class-chunk axis -------
    sc = s_ref[...].astype(f32) * inv_temp          # (TB, CC) student / T
    tc = t_ref[...].astype(f32) * inv_temp          # (TB, CC) teacher / T
    ms_old = m_s[...]
    mt_old = m_t[...]
    ms_new = jnp.maximum(ms_old, jnp.max(sc, axis=-1, keepdims=True))
    mt_new = jnp.maximum(mt_old, jnp.max(tc, axis=-1, keepdims=True))
    corr_s = jnp.exp(ms_old - ms_new)               # exp(-inf) = 0 on j == 0
    corr_t = jnp.exp(mt_old - mt_new)
    se = jnp.exp(sc - ms_new)                       # (TB, CC)
    te = jnp.exp(tc - mt_new)
    ssum[...] = ssum[...] * corr_s + jnp.sum(se, axis=-1, keepdims=True)
    tsum[...] = tsum[...] * corr_t + jnp.sum(te, axis=-1, keepdims=True)
    cross[...] = (cross[...] * corr_t
                  + jnp.sum(te * (tc - sc), axis=-1, keepdims=True))
    if is_t2:
        # exp(s - T*max(s/T)) == se**2 exactly for T == 2 -> reuse the KL exp.
        z[...] = z[...] * (corr_s * corr_s) + jnp.sum(se * se, axis=-1,
                                                      keepdims=True)
    else:
        # m = T * max(s/T) is the stable shift; no extra full-width max needed.
        z[...] = (z[...] * jnp.exp((ms_old - ms_new) * temp)
                  + jnp.sum(jnp.exp((sc - ms_new) * temp), axis=-1,
                            keepdims=True))
    m_s[...] = ms_new
    m_t[...] = mt_new

    # ---- finalize: per-row losses, ragged-row mask, accumulate -------------
    @pl.when(j == n_chunks - 1)
    def _():
        kl_rows = (cross[...] / tsum[...] + (m_s[...] - m_t[...])
                   + jnp.log(ssum[...]) - jnp.log(tsum[...]))     # (TB, 1)
        # logsumexp(student) = T*max(student/T) + log(z); label pick hoisted
        # to the wrapper (sat_ref).
        ce_rows = temp * m_s[...] + jnp.log(z[...]) - sat_ref[...]

        row = jax.lax.broadcasted_iota(jnp.int32, (block_rows, 1), 0)
        # Unclamped tile index: masks both the ragged batch tail and the
        # duplicated (clamped) tile when the tile count is odd.
        global_row = (g * inner_steps + i) * block_rows + row
        valid = global_row < batch
        kl_part = jnp.sum(jnp.where(valid, kl_rows, 0.0))
        ce_part = jnp.sum(jnp.where(valid, ce_rows, 0.0))

        contrib = (f32(alpha) * temp * temp * kl_part
                   + f32(1.0 - alpha) * ce_part) * f32(1.0 / batch)
        out_ref[...] += contrib     # resident (1, 8, 128) block per core


def _round_up(x, m):
    return (x + m - 1) // m * m


def _vmem_budgets():
    """(per-step working-set budget, scoped vmem limit) per TPU generation."""
    try:
        phys = int(getattr(pltpu.get_tpu_info(), "vmem_capacity_bytes",
                           128 << 20))
    except Exception:
        phys = 128 << 20
    if phys <= (64 << 20):
        # v7x: 64 MiB per TensorCore, both cores allocate concurrently.
        return 14 << 20, 30 << 20
    # v5e / v6e: 128 MiB physical; raise the scoped limit above v5e's 16 MiB
    # default so the chosen tile is safe on both.
    return 24 << 20, 48 << 20


def _pick_class_chunk(num_classes, requested):
    if requested is not None:
        if (0 < requested < num_classes and num_classes % requested == 0
                and requested % 128 == 0):
            return requested
        return num_classes
    # Auto: only chunk at vocab scale, and only when a 128-multiple divides C.
    if num_classes > 8192 and num_classes % 128 == 0:
        for cand in range(2048, 127, -128):
            if num_classes % cand == 0:
                return cand
    return num_classes


def _pick_block_rows(batch, chunk_cols, itemsize, budget_bytes):
    # Per-row working set of one grid step:
    #   2 logit inputs x 2 pipeline buffers at chunk width (native dtype)
    # + ~8 chunk-width f32 temporaries (casts, scaled logits, exps, products)
    # + 6 (TB, 1) f32 running-stat scratches (lane-padded to 128)
    per_row = chunk_cols * (4 * itemsize + 8 * 4) + 6 * 128 * 4 + 16
    tb = budget_bytes // max(per_row, 1)
    tb = max(8, min(2048, tb))
    tb = min(tb, _round_up(batch, 8))
    return max(8, (tb // 8) * 8)


def distillation_loss(student_logits, teacher_logits, labels,
                      temperature=2.0, alpha=0.3,
                      block_rows=None, class_chunk=None):
    """student/teacher logits: (B, C) float (f32 or bf16); labels: (B,) int."""
    B, C = student_logits.shape
    itemsize = jnp.dtype(student_logits.dtype).itemsize

    # CE label pick hoisted out of the kernel: touches only B elements of HBM
    # and removes the iota/compare/select/row-sum chain from the hot loop.
    s_at_label = jnp.take_along_axis(
        student_logits, labels.astype(jnp.int32).reshape(B, 1), axis=1
    ).astype(jnp.float32)

    cc = _pick_class_chunk(C, class_chunk)
    n_chunks = C // cc

    budget, vmem_limit = _vmem_budgets()
    tb = block_rows or _pick_block_rows(B, cc, itemsize, budget)
    tb = max(8, (int(tb) + 7) // 8 * 8)
    nt = pl.cdiv(B, tb)                       # number of batch tiles
    # Always feed both v7x TensorCores when there is more than one batch tile:
    # an odd tile count gets a clamped duplicate tile that is fully row-masked.
    num_par = 2 if nt >= 2 else 1
    inner = pl.cdiv(nt, num_par)

    kernel = functools.partial(
        _distill_loss_kernel,
        temperature=float(temperature), alpha=float(alpha),
        batch=B, block_rows=tb, inner_steps=inner)

    def batch_block(g, i, j):
        return jnp.minimum(g * inner + i, nt - 1)   # clamp duplicate tiles

    logit_spec = pl.BlockSpec((tb, cc), lambda g, i, j: (batch_block(g, i, j), j))
    sat_spec = pl.BlockSpec((tb, 1), lambda g, i, j: (batch_block(g, i, j), 0))
    # Per-core partials live in a lane-dense (8, 128) block so the out_spec
    # satisfies the (8, 128) tiling constraint; the wrapper reads [:, 0, 0].
    out_spec = pl.BlockSpec((1, 8, 128), lambda g, i, j: (g, 0, 0))

    n_trans = 2 if float(temperature) == 2.0 else 3
    out = pl.pallas_call(
        kernel,
        out_shape=jax.ShapeDtypeStruct((num_par, 8, 128), jnp.float32),
        grid_spec=pltpu.PrefetchScalarGridSpec(
            num_scalar_prefetch=0,
            grid=(num_par, inner, n_chunks),
            in_specs=[logit_spec, logit_spec, sat_spec],
            out_specs=out_spec,
            scratch_shapes=[pltpu.VMEM((tb, 1), jnp.float32)] * 6),
        compiler_params=pltpu.CompilerParams(
            dimension_semantics=("parallel", "arbitrary", "arbitrary"),
            vmem_limit_bytes=vmem_limit),
        cost_estimate=pl.CostEstimate(
            flops=int(12 * B * C),
            transcendentals=int(n_trans * B * C + 8 * B * n_chunks),
            bytes_accessed=int(2 * B * C * itemsize + 8 * B
                               + num_par * 8 * 128 * 4)),
    )(student_logits, teacher_logits, s_at_label)
    return jnp.sum(out[:, 0, 0])


def _reference_loss(student_logits, teacher_logits, labels,
                    temperature=2.0, alpha=0.3):
    """Pure-JAX reference matching PyTorch KLDivLoss(batchmean)*T^2 + CE(mean)."""
    T = temperature
    s = student_logits.astype(jnp.float32)
    t = teacher_logits.astype(jnp.float32)
    log_p_s = jax.nn.log_softmax(s / T, axis=-1)
    log_p_t = jax.nn.log_softmax(t / T, axis=-1)
    p_t = jnp.exp(log_p_t)
    kl = jnp.mean(jnp.sum(p_t * (log_p_t - log_p_s), axis=-1)) * T * T
    log_p = jax.nn.log_softmax(s, axis=-1)
    ce = -jnp.mean(jnp.take_along_axis(log_p, labels[:, None], axis=-1)[:, 0])
    return alpha * kl + (1.0 - alpha) * ce


if __name__ == "__main__":
    key = jax.random.PRNGKey(0)
    k1, k2, k3, k4, k5, k6 = jax.random.split(key, 6)

    # Case 1: default path (single class chunk, single batch tile), T == 2.
    B, C = 8, 32
    student = jax.random.normal(k1, (B, C), jnp.float32)
    teacher = jax.random.normal(k2, (B, C), jnp.float32)
    labels = jax.random.randint(k3, (B,), 0, C, dtype=jnp.int32)
    loss = jax.block_until_ready(
        distillation_loss(student, teacher, labels, temperature=2.0, alpha=0.3))
    ref = jax.block_until_ready(
        _reference_loss(student, teacher, labels, temperature=2.0, alpha=0.3))
    assert jnp.allclose(loss, ref, atol=1e-5, rtol=1e-4), (loss, ref)

    # Case 2: bf16 inputs, general T, odd tile count (clamped duplicate tile
    # on the always-2-way core split must be fully masked).
    B2, C2 = 24, 32
    s2 = jax.random.normal(k4, (B2, C2), jnp.float32).astype(jnp.bfloat16)
    t2 = jax.random.normal(k5, (B2, C2), jnp.float32).astype(jnp.bfloat16)
    l2 = jax.random.randint(k6, (B2,), 0, C2, dtype=jnp.int32)
    loss2 = jax.block_until_ready(
        distillation_loss(s2, t2, l2, temperature=3.0, alpha=0.5, block_rows=8))
    ref2 = jax.block_until_ready(
        _reference_loss(s2, t2, l2, temperature=3.0, alpha=0.5))
    assert jnp.allclose(loss2, ref2, atol=5e-5, rtol=5e-4), (loss2, ref2)

    # Case 3: ragged batch (B % block_rows != 0) + forced class chunking, which
    # exercises the online log-sum-exp path over 2 class chunks.
    B3, C3 = 13, 256
    s3 = jax.random.normal(k1, (B3, C3), jnp.float32)
    t3 = jax.random.normal(k2, (B3, C3), jnp.float32)
    l3 = jax.random.randint(k3, (B3,), 0, C3, dtype=jnp.int32)
    loss3 = jax.block_until_ready(
        distillation_loss(s3, t3, l3, temperature=2.0, alpha=0.3,
                          block_rows=8, class_chunk=128))
    ref3 = jax.block_until_ready(
        _reference_loss(s3, t3, l3, temperature=2.0, alpha=0.3))
    assert jnp.allclose(loss3, ref3, atol=1e-5, rtol=1e-4), (loss3, ref3)

    print("KERNEL_OK")
</pallas_src>

<mosaic_0001>
module attributes {stable_mosaic.version = 11 : i64} {
  func.func @_distill_loss_kernel(%arg0: i32, %arg1: i32, %arg2: i32, %arg3: memref<8x32xf32, #tpu.memory_space<vmem>>, %arg4: memref<8x32xf32, #tpu.memory_space<vmem>>, %arg5: memref<8x1xf32, #tpu.memory_space<vmem>>, %arg6: memref<1x8x128xf32, #tpu.memory_space<vmem>>, %arg7: memref<8x1xf32, #tpu.memory_space<vmem>>, %arg8: memref<8x1xf32, #tpu.memory_space<vmem>>, %arg9: memref<8x1xf32, #tpu.memory_space<vmem>>, %arg10: memref<8x1xf32, #tpu.memory_space<vmem>>, %arg11: memref<8x1xf32, #tpu.memory_space<vmem>>, %arg12: memref<8x1xf32, #tpu.memory_space<vmem>>) attributes {dimension_semantics = [#tpu.dimension_semantics<parallel>, #tpu.dimension_semantics<arbitrary>, #tpu.dimension_semantics<arbitrary>], iteration_bounds = array<i64: 1, 1, 1>, scalar_prefetch = 0 : i64, scratch_operands = 6 : i64, tpu.core_type = #tpu.core_type<tc>, window_params = [{transform_indices = @transform_0, window_bounds = array<i64: 8, 32>}, {transform_indices = @transform_1, window_bounds = array<i64: 8, 32>}, {transform_indices = @transform_2, window_bounds = array<i64: 8, 1>}, {transform_indices = @transform_3, window_bounds = array<i64: 1, 8, 128>}]} {
    %c0_i32 = arith.constant 0 : i32
    %0 = arith.cmpi eq, %arg1, %c0_i32 : i32
    %c0_i32_0 = arith.constant 0 : i32
    %1 = arith.cmpi eq, %arg2, %c0_i32_0 : i32
    %2 = arith.andi %0, %1 : i1
    %3 = arith.extui %2 : i1 to i32
    %c0_i32_1 = arith.constant 0 : i32
    %4 = arith.cmpi ne, %3, %c0_i32_1 : i32
    scf.if %4 {
      %cst_41 = arith.constant 0.000000e+00 : f32
      %65 = vector.broadcast %cst_41 : f32 to vector<1x8x128xf32>
      %c0_42 = arith.constant 0 : index
      %c0_43 = arith.constant 0 : index
      %c0_44 = arith.constant 0 : index
      %66 = vector.load %arg6[%c0_42, %c0_43, %c0_44] : memref<1x8x128xf32, #tpu.memory_space<vmem>>, vector<1x8x128xf32>
      tpu.vector_store %arg6[%c0_42, %c0_43, %c0_44], %65 {strides = array<i32>} : memref<1x8x128xf32, #tpu.memory_space<vmem>>, vector<1x8x128xf32>,
    } else {
    }
    %c0_i32_2 = arith.constant 0 : i32
    %5 = arith.cmpi eq, %arg2, %c0_i32_2 : i32
    %6 = arith.extui %5 : i1 to i32
    %c0_i32_3 = arith.constant 0 : i32
    %7 = arith.cmpi ne, %6, %c0_i32_3 : i32
    scf.if %7 {
      %cst_41 = arith.constant 0xFF800000 : f32
      %65 = vector.broadcast %cst_41 : f32 to vector<8x1xf32>
      %c0_42 = arith.constant 0 : index
      %c0_43 = arith.constant 0 : index
      %66 = vector.load %arg7[%c0_42, %c0_43] : memref<8x1xf32, #tpu.memory_space<vmem>>, vector<8x1xf32>
      tpu.vector_store %arg7[%c0_42, %c0_43], %65 {strides = array<i32>} : memref<8x1xf32, #tpu.memory_space<vmem>>, vector<8x1xf32>,
      %cst_44 = arith.constant 0xFF800000 : f32
      %67 = vector.broadcast %cst_44 : f32 to vector<8x1xf32>
      %c0_45 = arith.constant 0 : index
      %c0_46 = arith.constant 0 : index
      %68 = vector.load %arg8[%c0_45, %c0_46] : memref<8x1xf32, #tpu.memory_space<vmem>>, vector<8x1xf32>
      tpu.vector_store %arg8[%c0_45, %c0_46], %67 {strides = array<i32>} : memref<8x1xf32, #tpu.memory_space<vmem>>, vector<8x1xf32>,
      %cst_47 = arith.constant 0.000000e+00 : f32
      %69 = vector.broadcast %cst_47 : f32 to vector<8x1xf32>
      %c0_48 = arith.constant 0 : index
      %c0_49 = arith.constant 0 : index
      %70 = vector.load %arg9[%c0_48, %c0_49] : memref<8x1xf32, #tpu.memory_space<vmem>>, vector<8x1xf32>
      tpu.vector_store %arg9[%c0_48, %c0_49], %69 {strides = array<i32>} : memref<8x1xf32, #tpu.memory_space<vmem>>, vector<8x1xf32>,
      %cst_50 = arith.constant 0.000000e+00 : f32
      %71 = vector.broadcast %cst_50 : f32 to vector<8x1xf32>
      %c0_51 = arith.constant 0 : index
      %c0_52 = arith.constant 0 : index
      %72 = vector.load %arg10[%c0_51, %c0_52] : memref<8x1xf32, #tpu.memory_space<vmem>>, vector<8x1xf32>
      tpu.vector_store %arg10[%c0_51, %c0_52], %71 {strides = array<i32>} : memref<8x1xf32, #tpu.memory_space<vmem>>, vector<8x1xf32>,
      %cst_53 = arith.constant 0.000000e+00 : f32
      %73 = vector.broadcast %cst_53 : f32 to vector<8x1xf32>
      %c0_54 = arith.constant 0 : index
      %c0_55 = arith.constant 0 : index
      %74 = vector.load %arg11[%c0_54, %c0_55] : memref<8x1xf32, #tpu.memory_space<vmem>>, vector<8x1xf32>
      tpu.vector_store %arg11[%c0_54, %c0_55], %73 {strides = array<i32>} : memref<8x1xf32, #tpu.memory_space<vmem>>, vector<8x1xf32>,
      %cst_56 = arith.constant 0.000000e+00 : f32
      %75 = vector.broadcast %cst_56 : f32 to vector<8x1xf32>
      %c0_57 = arith.constant 0 : index
      %c0_58 = arith.constant 0 : index
      %76 = vector.load %arg12[%c0_57, %c0_58] : memref<8x1xf32, #tpu.memory_space<vmem>>, vector<8x1xf32>
      tpu.vector_store %arg12[%c0_57, %c0_58], %75 {strides = array<i32>} : memref<8x1xf32, #tpu.memory_space<vmem>>, vector<8x1xf32>,
    } else {
    }
    %c0 = arith.constant 0 : index
    %c0_4 = arith.constant 0 : index
    %8 = vector.load %arg3[%c0, %c0_4] : memref<8x32xf32, #tpu.memory_space<vmem>>, vector<8x32xf32>
    %cst = arith.constant 5.000000e-01 : f32
    %9 = vector.broadcast %cst : f32 to vector<8x32xf32>
    %10 = arith.mulf %8, %9 : vector<8x32xf32>
    %c0_5 = arith.constant 0 : index
    %c0_6 = arith.constant 0 : index
    %11 = vector.load %arg4[%c0_5, %c0_6] : memref<8x32xf32, #tpu.memory_space<vmem>>, vector<8x32xf32>
    %cst_7 = arith.constant 5.000000e-01 : f32
    %12 = vector.broadcast %cst_7 : f32 to vector<8x32xf32>
    %13 = arith.mulf %11, %12 : vector<8x32xf32>
    %c0_8 = arith.constant 0 : index
    %c0_9 = arith.constant 0 : index
    %14 = vector.load %arg7[%c0_8, %c0_9] : memref<8x1xf32, #tpu.memory_space<vmem>>, vector<8x1xf32>
    %c0_10 = arith.constant 0 : index
    %c0_11 = arith.constant 0 : index
    %15 = vector.load %arg8[%c0_10, %c0_11] : memref<8x1xf32, #tpu.memory_space<vmem>>, vector<8x1xf32>
    %cst_12 = arith.constant dense<0xFF800000> : vector<8xf32>
    %16 = vector.multi_reduction <maximumf>, %10, %cst_12 [1] : vector<8x32xf32> to vector<8xf32>
    %17 = vector.shape_cast %16 : vector<8xf32> to vector<8x1xf32>
    %18 = arith.maximumf %14, %17 : vector<8x1xf32>
    %cst_13 = arith.constant dense<0xFF800000> : vector<8xf32>
    %19 = vector.multi_reduction <maximumf>, %13, %cst_13 [1] : vector<8x32xf32> to vector<8xf32>
    %20 = vector.shape_cast %19 : vector<8xf32> to vector<8x1xf32>
    %21 = arith.maximumf %15, %20 : vector<8x1xf32>
    %22 = arith.subf %14, %18 : vector<8x1xf32>
    %23 = math.exp %22 : vector<8x1xf32>
    %24 = arith.subf %15, %21 : vector<8x1xf32>
    %25 = math.exp %24 : vector<8x1xf32>
    %26 = vector.broadcast %18 : vector<8x1xf32> to vector<8x32xf32>
    %27 = arith.subf %10, %26 : vector<8x32xf32>
    %28 = math.exp %27 : vector<8x32xf32>
    %29 = vector.broadcast %21 : vector<8x1xf32> to vector<8x32xf32>
    %30 = arith.subf %13, %29 : vector<8x32xf32>
    %31 = math.exp %30 : vector<8x32xf32>
    %c0_14 = arith.constant 0 : index
    %c0_15 = arith.constant 0 : index
    %32 = vector.load %arg9[%c0_14, %c0_15] : memref<8x1xf32, #tpu.memory_space<vmem>>, vector<8x1xf32>
    %33 = arith.mulf %32, %23 : vector<8x1xf32>
    %cst_16 = arith.constant dense<0.000000e+00> : vector<8xf32>
    %34 = vector.multi_reduction <add>, %28, %cst_16 [1] : vector<8x32xf32> to vector<8xf32>
    %35 = vector.shape_cast %34 : vector<8xf32> to vector<8x1xf32>
    %36 = arith.addf %33, %35 : vector<8x1xf32>
    %c0_17 = arith.constant 0 : index
    %c0_18 = arith.constant 0 : index
    %37 = vector.load %arg9[%c0_17, %c0_18] : memref<8x1xf32, #tpu.memory_space<vmem>>, vector<8x1xf32>
    tpu.vector_store %arg9[%c0_17, %c0_18], %36 {strides = array<i32>} : memref<8x1xf32, #tpu.memory_space<vmem>>, vector<8x1xf32>,
    %c0_19 = arith.constant 0 : index
    %c0_20 = arith.constant 0 : index
    %38 = vector.load %arg10[%c0_19, %c0_20] : memref<8x1xf32, #tpu.memory_space<vmem>>, vector<8x1xf32>
    %39 = arith.mulf %38, %25 : vector<8x1xf32>
    %cst_21 = arith.constant dense<0.000000e+00> : vector<8xf32>
    %40 = vector.multi_reduction <add>, %31, %cst_21 [1] : vector<8x32xf32> to vector<8xf32>
    %41 = vector.shape_cast %40 : vector<8xf32> to vector<8x1xf32>
    %42 = arith.addf %39, %41 : vector<8x1xf32>
    %c0_22 = arith.constant 0 : index
    %c0_23 = arith.constant 0 : index
    %43 = vector.load %arg10[%c0_22, %c0_23] : memref<8x1xf32, #tpu.memory_space<vmem>>, vector<8x1xf32>
    tpu.vector_store %arg10[%c0_22, %c0_23], %42 {strides = array<i32>} : memref<8x1xf32, #tpu.memory_space<vmem>>, vector<8x1xf32>,
    %c0_24 = arith.constant 0 : index
    %c0_25 = arith.constant 0 : index
    %44 = vector.load %arg11[%c0_24, %c0_25] : memref<8x1xf32, #tpu.memory_space<vmem>>, vector<8x1xf32>
    %45 = arith.mulf %44, %25 : vector<8x1xf32>
    %46 = arith.subf %13, %10 : vector<8x32xf32>
    %47 = arith.mulf %31, %46 : vector<8x32xf32>
    %cst_26 = arith.constant dense<0.000000e+00> : vector<8xf32>
    %48 = vector.multi_reduction <add>, %47, %cst_26 [1] : vector<8x32xf32> to vector<8xf32>
    %49 = vector.shape_cast %48 : vector<8xf32> to vector<8x1xf32>
    %50 = arith.addf %45, %49 : vector<8x1xf32>
    %c0_27 = arith.constant 0 : index
    %c0_28 = arith.constant 0 : index
    %51 = vector.load %arg11[%c0_27, %c0_28] : memref<8x1xf32, #tpu.memory_space<vmem>>, vector<8x1xf32>
    tpu.vector_store %arg11[%c0_27, %c0_28], %50 {strides = array<i32>} : memref<8x1xf32, #tpu.memory_space<vmem>>, vector<8x1xf32>,
    %c0_29 = arith.constant 0 : index
    %c0_30 = arith.constant 0 : index
    %52 = vector.load %arg12[%c0_29, %c0_30] : memref<8x1xf32, #tpu.memory_space<vmem>>, vector<8x1xf32>
    %53 = arith.mulf %23, %23 : vector<8x1xf32>
    %54 = arith.mulf %52, %53 : vector<8x1xf32>
    %55 = arith.mulf %28, %28 : vector<8x32xf32>
    %cst_31 = arith.constant dense<0.000000e+00> : vector<8xf32>
    %56 = vector.multi_reduction <add>, %55, %cst_31 [1] : vector<8x32xf32> to vector<8xf32>
    %57 = vector.shape_cast %56 : vector<8xf32> to vector<8x1xf32>
    %58 = arith.addf %54, %57 : vector<8x1xf32>
    %c0_32 = arith.constant 0 : index
    %c0_33 = arith.constant 0 : index
    %59 = vector.load %arg12[%c0_32, %c0_33] : memref<8x1xf32, #tpu.memory_space<vmem>>, vector<8x1xf32>
    tpu.vector_store %arg12[%c0_32, %c0_33], %58 {strides = array<i32>} : memref<8x1xf32, #tpu.memory_space<vmem>>, vector<8x1xf32>,
    %c0_34 = arith.constant 0 : index
    %c0_35 = arith.constant 0 : index
    %60 = vector.load %arg7[%c0_34, %c0_35] : memref<8x1xf32, #tpu.memory_space<vmem>>, vector<8x1xf32>
    tpu.vector_store %arg7[%c0_34, %c0_35], %18 {strides = array<i32>} : memref<8x1xf32, #tpu.memory_space<vmem>>, vector<8x1xf32>,
    %c0_36 = arith.constant 0 : index
    %c0_37 = arith.constant 0 : index
    %61 = vector.load %arg8[%c0_36, %c0_37] : memref<8x1xf32, #tpu.memory_space<vmem>>, vector<8x1xf32>
    tpu.vector_store %arg8[%c0_36, %c0_37], %21 {strides = array<i32>} : memref<8x1xf32, #tpu.memory_space<vmem>>, vector<8x1xf32>,
    %c0_i32_38 = arith.constant 0 : i32
    %62 = arith.cmpi eq, %arg2, %c0_i32_38 : i32
    %63 = arith.extui %62 : i1 to i32
    %cst_39 = arith.constant 2.000000e+00 : f32
    %c0_i32_40 = arith.constant 0 : i32
    %64 = arith.cmpi ne, %63, %c0_i32_40 : i32
    scf.if %64 {
      %c0_41 = arith.constant 0 : index
      %c0_42 = arith.constant 0 : index
      %65 = vector.load %arg11[%c0_41, %c0_42] : memref<8x1xf32, #tpu.memory_space<vmem>>, vector<8x1xf32>
      %c0_43 = arith.constant 0 : index
      %c0_44 = arith.constant 0 : index
      %66 = vector.load %arg10[%c0_43, %c0_44] : memref<8x1xf32, #tpu.memory_space<vmem>>, vector<8x1xf32>
      %67 = arith.divf %65, %66 : vector<8x1xf32>
      %c0_45 = arith.constant 0 : index
      %c0_46 = arith.constant 0 : index
      %68 = vector.load %arg7[%c0_45, %c0_46] : memref<8x1xf32, #tpu.memory_space<vmem>>, vector<8x1xf32>
      %c0_47 = arith.constant 0 : index
      %c0_48 = arith.constant 0 : index
      %69 = vector.load %arg8[%c0_47, %c0_48] : memref<8x1xf32, #tpu.memory_space<vmem>>, vector<8x1xf32>
      %70 = arith.subf %68, %69 : vector<8x1xf32>
      %71 = arith.addf %67, %70 : vector<8x1xf32>
      %c0_49 = arith.constant 0 : index
      %c0_50 = arith.constant 0 : index
      %72 = vector.load %arg9[%c0_49, %c0_50] : memref<8x1xf32, #tpu.memory_space<vmem>>, vector<8x1xf32>
      %73 = math.log %72 : vector<8x1xf32>
      %74 = arith.addf %71, %73 : vector<8x1xf32>
      %c0_51 = arith.constant 0 : index
      %c0_52 = arith.constant 0 : index
      %75 = vector.load %arg10[%c0_51, %c0_52] : memref<8x1xf32, #tpu.memory_space<vmem>>, vector<8x1xf32>
      %76 = math.log %75 : vector<8x1xf32>
      %77 = arith.subf %74, %76 : vector<8x1xf32>
      %c0_53 = arith.constant 0 : index
      %c0_54 = arith.constant 0 : index
      %78 = vector.load %arg7[%c0_53, %c0_54] : memref<8x1xf32, #tpu.memory_space<vmem>>, vector<8x1xf32>
      %79 = vector.broadcast %cst_39 : f32 to vector<8x1xf32>
      %80 = arith.mulf %79, %78 : vector<8x1xf32>
      %c0_55 = arith.constant 0 : index
      %c0_56 = arith.constant 0 : index
      %81 = vector.load %arg12[%c0_55, %c0_56] : memref<8x1xf32, #tpu.memory_space<vmem>>, vector<8x1xf32>
      %82 = math.log %81 : vector<8x1xf32>
      %83 = arith.addf %80, %82 : vector<8x1xf32>
      %c0_57 = arith.constant 0 : index
      %c0_58 = arith.constant 0 : index
      %84 = vector.load %arg5[%c0_57, %c0_58] : memref<8x1xf32, #tpu.memory_space<vmem>>, vector<8x1xf32>
      %85 = arith.subf %83, %84 : vector<8x1xf32>
      %86 = tpu.iota {dimensions = array<i32: 0>} : vector<8x1xi32>
      %c1_i32 = arith.constant 1 : i32
      %87 = arith.muli %arg0, %c1_i32 : i32
      %88 = arith.addi %87, %arg1 : i32
      %c8_i32 = arith.constant 8 : i32
      %89 = arith.muli %88, %c8_i32 : i32
      %90 = vector.broadcast %89 : i32 to vector<8x1xi32>
      %91 = arith.addi %90, %86 : vector<8x1xi32>
      %c8_i32_59 = arith.constant 8 : i32
      %92 = vector.broadcast %c8_i32_59 : i32 to vector<8x1xi32>
      %93 = arith.cmpi slt, %91, %92 : vector<8x1xi32>
      %cst_60 = arith.constant 0.000000e+00 : f32
      %94 = vector.broadcast %cst_60 : f32 to vector<8x1xf32>
      %95 = arith.select %93, %77, %94 : vector<8x1xi1>, vector<8x1xf32>
      %96 = vector.shape_cast %95 : vector<8x1xf32> to vector<1x8x1xf32>
      %cst_61 = arith.constant dense<0.000000e+00> : vector<1xf32>
      %97 = vector.multi_reduction <add>, %96, %cst_61 [1, 2] : vector<1x8x1xf32> to vector<1xf32>
      %98 = vector.shape_cast %97 : vector<1xf32> to vector<1x1x1xf32>
      %99 = vector.extract %98[0, 0, 0] : f32 from vector<1x1x1xf32>
      %cst_62 = arith.constant 0.000000e+00 : f32
      %100 = vector.broadcast %cst_62 : f32 to vector<8x1xf32>
      %101 = arith.select %93, %85, %100 : vector<8x1xi1>, vector<8x1xf32>
      %102 = vector.shape_cast %101 : vector<8x1xf32> to vector<1x8x1xf32>
      %cst_63 = arith.constant dense<0.000000e+00> : vector<1xf32>
      %103 = vector.multi_reduction <add>, %102, %cst_63 [1, 2] : vector<1x8x1xf32> to vector<1xf32>
      %104 = vector.shape_cast %103 : vector<1xf32> to vector<1x1x1xf32>
      %105 = vector.extract %104[0, 0, 0] : f32 from vector<1x1x1xf32>
      %cst_64 = arith.constant 3.000000e-01 : f32
      %106 = arith.mulf %cst_64, %cst_39 : f32
      %107 = arith.mulf %106, %cst_39 : f32
      %108 = arith.mulf %107, %99 : f32
      %cst_65 = arith.constant 0.699999988 : f32
      %109 = arith.mulf %cst_65, %105 : f32
      %110 = arith.addf %108, %109 : f32
      %cst_66 = arith.constant 1.250000e-01 : f32
      %111 = arith.mulf %110, %cst_66 : f32
      %c0_67 = arith.constant 0 : index
      %c0_68 = arith.constant 0 : index
      %c0_69 = arith.constant 0 : index
      %112 = vector.load %arg6[%c0_67, %c0_68, %c0_69] : memref<1x8x128xf32, #tpu.memory_space<vmem>>, vector<1x8x128xf32>
      %113 = vector.broadcast %111 : f32 to vector<1x8x128xf32>
      %114 = arith.addf %112, %113 : vector<1x8x128xf32>
      %c0_70 = arith.constant 0 : index
      %c0_71 = arith.constant 0 : index
      %c0_72 = arith.constant 0 : index
      %115 = vector.load %arg6[%c0_70, %c0_71, %c0_72] : memref<1x8x128xf32, #tpu.memory_space<vmem>>, vector<1x8x128xf32>
      tpu.vector_store %arg6[%c0_70, %c0_71, %c0_72], %114 {strides = array<i32>} : memref<1x8x128xf32, #tpu.memory_space<vmem>>, vector<1x8x128xf32>,
    } else {
    }
    return
  }
  func.func @transform_0(%arg0: i32, %arg1: i32, %arg2: i32) -> (i32, i32) {
    %c1_i32 = arith.constant 1 : i32
    %0 = arith.muli %arg0, %c1_i32 : i32
    %1 = arith.addi %0, %arg1 : i32
    %c0_i32 = arith.constant 0 : i32
    %2 = arith.minsi %1, %c0_i32 : i32
    %c0_i32_0 = arith.constant 0 : i32
    return %2, %arg2 : i32, i32
  }
  func.func @transform_1(%arg0: i32, %arg1: i32, %arg2: i32) -> (i32, i32) {
    %c1_i32 = arith.constant 1 : i32
    %0 = arith.muli %arg0, %c1_i32 : i32
    %1 = arith.addi %0, %arg1 : i32
    %c0_i32 = arith.constant 0 : i32
    %2 = arith.minsi %1, %c0_i32 : i32
    %c0_i32_0 = arith.constant 0 : i32
    return %2, %arg2 : i32, i32
  }
  func.func @transform_2(%arg0: i32, %arg1: i32, %arg2: i32) -> (i32, i32) {
    %c1_i32 = arith.constant 1 : i32
    %0 = arith.muli %arg0, %c1_i32 : i32
    %1 = arith.addi %0, %arg1 : i32
    %c0_i32 = arith.constant 0 : i32
    %2 = arith.minsi %1, %c0_i32 : i32
    %c0_i32_0 = arith.constant 0 : i32
    %c0_i32_1 = arith.constant 0 : i32
    return %2, %c0_i32_0 : i32, i32
  }
  func.func @transform_3(%arg0: i32, %arg1: i32, %arg2: i32) -> (i32, i32, i32) {
    %c0_i32 = arith.constant 0 : i32
    %c0_i32_0 = arith.constant 0 : i32
    %c0_i32_1 = arith.constant 0 : i32
    return %arg0, %c0_i32, %c0_i32_0 : i32, i32, i32
  }
}

</mosaic_0001>

<llo_original>
// kernel: tpu_custom_call.1
$region0: #{tpu_custom_call.1}
  #allocation0 [shape = 'u32[]', space=smem, size = 0x4, offset = 0x4, fixed_abs, tag = 'smem constant byte address 0x4 - core index']
  #allocation1 [shape = 'u32[72,128]{1,0:T(1,128)}', space=vmem, size = 0x9000, scoped, tag = 'internal scratch']
  #allocation2 [shape = 'f32[8,1]{1,0:T(8,128)}', space=vmem, size = 0x1000, scoped, tag = 'scratch operand']
  #allocation3 [shape = 'f32[8,1]{1,0:T(8,128)}', space=vmem, size = 0x1000, scoped, tag = 'scratch operand']
  #allocation4 [shape = 'f32[8,1]{1,0:T(8,128)}', space=vmem, size = 0x1000, scoped, tag = 'scratch operand']
  #allocation5 [shape = 'f32[8,1]{1,0:T(8,128)}', space=vmem, size = 0x1000, scoped, tag = 'scratch operand']
  #allocation6 [shape = 'f32[8,1]{1,0:T(8,128)}', space=vmem, size = 0x1000, scoped, tag = 'scratch operand']
  #allocation7 [shape = 'f32[8,1]{1,0:T(8,128)}', space=vmem, size = 0x1000, scoped, tag = 'scratch operand']
  %s0 = inlined_call_operand.vmem [shape: f32[8,32], index: 0, kind: input, shape index: {}]
  %s1 = inlined_call_operand.hbm [shape: f32[8,32], index: 1, kind: input, shape index: {}]
  %s2 = inlined_call_operand.vmem [shape: f32[8,1], index: 2, kind: input, shape index: {}]
  %s3 = inlined_call_operand.hbm [shape: f32[1,8,128], index: 3, kind: output, shape index: {}]
  %s4 = sld [smem:[#allocation0]]
  $region38: #{tpu_custom_call.1} parent=0
    _
  %s6 = ssub.s32 1, %s4
  %s7 = scalar_select 0, %s6, %s4
  $region1: #{tpu_custom_call.1} parent=0
    #allocation8 [shape = 'u8[4096]{0}', space=vmem, size = 0x1000, scoped, tag = 'input window, operand 1, single buffered']
    #allocation9 [shape = 's32[1]{0}', space=sflag, size = 0x4, scoped, tag = 'scoped memory for tpu_custom_call.1']
    #allocation10 [shape = 's32[1]{0}', space=sflag, size = 0x4, scoped, tag = 'scoped memory for tpu_custom_call.1']
    #allocation11 [shape = 'u8[4096]{0}', space=vmem, size = 0x1000, scoped, tag = 'output window, operand 0, single buffered']
    %8 = vsyncpa [#allocation9], 0
    %9 = vsyncpa [#allocation10], 0
    // Predicated region
    $region2: #{tpu_custom_call.1} parent=1 // pred_check
      _
    $region3: #{tpu_custom_call.1} parent=1 // pred_check_branch
      %11 = sbr.rel (0) target = $region5
    $region4: #{tpu_custom_call.1} parent=1 // pred_region
      %s12 = sadd.s32 0, 0
      %p13 = scmp.lt.s32.totalorder %s12, 0
      %s14 = scalar_select %p13, %s12, 0
      %p15 = scmp.lt.s32.totalorder %s14, 0
      %s16 = scalar_select %p15, %s14, 0
      %s17 = smul.addr %s16, 8
      %s18 = scalar_lea.vmem %s0, %s17
      %s19 = sadd.s32 0, 0
      %p20 = scmp.lt.s32.totalorder %s19, 0
      %s21 = scalar_select %p20, %s19, 0
    $region5: #{tpu_custom_call.1} parent=1 // pred_fallthru
      _
    // Predicated region
    $region6: #{tpu_custom_call.1} parent=1 // pred_check
      _
    $region7: #{tpu_custom_call.1} parent=1 // pred_check_branch
      %23 = sbr.rel (0) target = $region9
    $region8: #{tpu_custom_call.1} parent=1 // pred_region
      %s24 = sadd.s32 0, 0
      %p25 = scmp.lt.s32.totalorder %s24, 0
      %s26 = scalar_select %p25, %s24, 0
      %28 = vsyncadd [#allocation9], 0
      %s29 = smul.addr %s26, 8
      %s30 = scalar_lea.hbm %s1, %s29
      %s32 = sshll.u32 %s30, 4
      %s33 = int_to_ptr.hbm [resolvable:$true] %s32
      %s34 = sshll.u32 [#allocation8], 4
      %s35 = int_to_ptr.vmem [resolvable:$true] %s34
      %37 = dma.hbm_to_vmem [thread:$0]  %s33, 128, %s35, [#allocation9]
    $region9: #{tpu_custom_call.1} parent=1 // pred_fallthru
      _
    // Predicated region
    $region10: #{tpu_custom_call.1} parent=1 // pred_check
      _
    $region11: #{tpu_custom_call.1} parent=1 // pred_check_branch
      %39 = sbr.rel (0) target = $region13
    $region12: #{tpu_custom_call.1} parent=1 // pred_region
      %s40 = sadd.s32 0, 0
      %p41 = scmp.lt.s32.totalorder %s40, 0
      %s42 = scalar_select %p41, %s40, 0
      %p43 = scmp.lt.s32.totalorder %s42, 0
      %s44 = scalar_select %p43, %s42, 0
      %s45 = smul.addr %s44, 8
      %s46 = scalar_lea.vmem %s2, %s45
      %s47 = sadd.s32 0, 0
      %p48 = scmp.lt.s32.totalorder %s47, 0
      %s49 = scalar_select %p48, %s47, 0
    $region13: #{tpu_custom_call.1} parent=1 // pred_fallthru
      _
    // Predicated region
    $region14: #{tpu_custom_call.1} parent=1 // pred_check
      _
    $region15: #{tpu_custom_call.1} parent=1 // pred_check_branch
      %51 = sbr.rel (0) target = $region17
    $region16: #{tpu_custom_call.1} parent=1 // pred_region
      %53 = dma.done [#allocation9], 128
    $region17: #{tpu_custom_call.1} parent=1 // pred_fallthru
      _
    %s54 = sadd.s32 0, 0
    %p55 = scmp.lt.s32.totalorder %s54, 0
    %s56 = scalar_select %p55, %s54, 0
    %p57 = scmp.lt.s32.totalorder %s56, 0
    %s58 = scalar_select %p57, %s56, 0
    %s59 = smul.addr %s58, 8
    %s60 = scalar_lea.vmem %s0, %s59
    %s61 = sadd.s32 0, 0
    %p62 = scmp.lt.s32.totalorder %s61, 0
    %s63 = scalar_select %p62, %s61, 0
    %p64 = scmp.lt.s32.totalorder %s63, 0
    %s65 = scalar_select %p64, %s63, 0
    %s66 = smul.addr %s65, 8
    %s67 = scalar_lea.vmem %s2, %s66
    %s68 = sadd.s32 0, 0
    %p69 = scmp.lt.s32.totalorder %s68, 0
    %s70 = scalar_select %p69, %s68, 0
    %p71 = scmp.lt.s32.totalorder %s70, 0
    %s72 = scalar_select %p71, %s70, 0
    %s73 = smul.addr %s72, 8
    %s74 = scalar_lea.vmem %s0, %s73
    %s75 = sadd.s32 0, 0
    %p76 = scmp.lt.s32.totalorder %s75, 0
    %s77 = scalar_select %p76, %s75, 0
    %s78 = sadd.s32 0, 0
    %p79 = scmp.lt.s32.totalorder %s78, 0
    %s80 = scalar_select %p79, %s78, 0
    %s81 = sadd.s32 0, 0
    %p82 = scmp.lt.s32.totalorder %s81, 0
    %s83 = scalar_select %p82, %s81, 0
    %p84 = scmp.lt.s32.totalorder %s83, 0
    %s85 = scalar_select %p84, %s83, 0
    %s86 = smul.addr %s85, 8
    %s87 = scalar_lea.vmem %s2, %s86
    %s88 = sadd.s32 0, 0
    %p89 = scmp.lt.s32.totalorder %s88, 0
    %s90 = scalar_select %p89, %s88, 0
    %p91 = scmp.eq.s32.totalorder 0, 0
    %p92 = scmp.eq.s32.totalorder 0, 0
    %p93 = pnand %p91, %p92
    %p94 = pneg %p93
    // Predicated region
    $region18: #{tpu_custom_call.1} parent=1 // pred_check
      _
    $region19: #{tpu_custom_call.1} parent=1 // pred_check_branch
      %96 = sbr.rel (%p93) target = $region21
    $region20: #{tpu_custom_call.1} parent=1 // pred_region
      %97 = vst [vmem:[#allocation11] sm:$0xff] 0.0
    $region21: #{tpu_custom_call.1} parent=1 // pred_fallthru
      _
    // Predicated region
    $region22: #{tpu_custom_call.1} parent=1 // pred_check
      %p98 = pneg %p92
    $region23: #{tpu_custom_call.1} parent=1 // pred_check_branch
      %100 = sbr.rel (%p98) target = $region25
    $region24: #{tpu_custom_call.1} parent=1 // pred_region
      %vm101 = vcmask 7168
      %102 = vst.msk [vmem:[#allocation2] sm:$0xff] %vm101, -inf
      %103 = vst.msk [vmem:[#allocation3] sm:$0xff] %vm101, -inf
      %104 = vst.msk [vmem:[#allocation4] sm:$0xff] %vm101, 0.0
      %105 = vst.msk [vmem:[#allocation5] sm:$0xff] %vm101, 0.0
      %106 = vst.msk [vmem:[#allocation6] sm:$0xff] %vm101, 0.0
      %107 = vst.msk [vmem:[#allocation7] sm:$0xff] %vm101, 0.0
    $region25: #{tpu_custom_call.1} parent=1 // pred_fallthru
      _
    %v108 = vld [vmem:[%s74] sm:$0xff]
    %v109 = vmul.f32 %v108, 0.5
    %v110 = vld [vmem:[#allocation8] sm:$0xff]
    %v111 = vmul.f32 %v110, 0.5
    %v112 = vld [vmem:[#allocation2] sm:$0xff]
    %v113 = vld [vmem:[#allocation3] sm:$0xff]
    %vm114 = vcmask 261120
    %v115 = vsel %vm114, %v109, -inf
    %116 = vmax.xlane.f32.xlu0 %v115
    %v117 = vpop.xlane.xlu0 %116
    %v118 = vmax.f32 %v112, %v117
    %v119 = vsel %vm114, %v111, -inf
    %120 = vmax.xlane.f32.xlu0 %v119
    %v121 = vpop.xlane.xlu0 %120
    %v122 = vmax.f32 %v113, %v121
    %v123 = vsub.f32 %v112, %v118
    %v124 = vmul.f32 %v123, 1.442695
    %v125 = vpow.pop %v124
    %v126 = vsub.f32 %v113, %v122
    %v127 = vmul.f32 %v126, 1.442695
    %v128 = vpow.pop %v127
    %130 = vset.pattern.permute.xlu0 0
    %131 = vperm.xlu0 %130, %v118
    %v132 = vpop.permute.xlu0 %131
    %v134 = vsub.f32 %v109, %v132
    %v135 = vmul.f32 %v134, 1.442695
    %v136 = vpow.pop %v135
    %138 = vset.pattern.permute.xlu0 0
    %139 = vperm.xlu0 %138, %v122
    %v140 = vpop.permute.xlu0 %139
    %v142 = vsub.f32 %v111, %v140
    %v143 = vmul.f32 %v142, 1.442695
    %v144 = vpow.pop %v143
    %v145 = vld [vmem:[#allocation4] sm:$0xff]
    %v146 = vmul.f32 %v145, %v125
    %v147 = vsel %vm114, %v136, 0.0
    %148 = vadd.xlane.f32.xlu0 %v147
    %v149 = vpop.xlane.xlu0 %148
    %v150 = vadd.f32 %v146, %v149
    %vm151 = vcmask 7168
    %152 = vst.msk [vmem:[#allocation4] sm:$0xff] %vm151, %v150
    %v153 = vld [vmem:[#allocation5] sm:$0xff]
    %v154 = vmul.f32 %v153, %v128
    %v155 = vsel %vm114, %v144, 0.0
    %156 = vadd.xlane.f32.xlu0 %v155
    %v157 = vpop.xlane.xlu0 %156
    %v158 = vadd.f32 %v154, %v157
    %159 = vst.msk [vmem:[#allocation5] sm:$0xff] %vm151, %v158
    %v160 = vld [vmem:[#allocation6] sm:$0xff]
    %v161 = vmul.f32 %v160, %v128
    %v162 = vsub.f32 %v111, %v109
    %v163 = vmul.f32 %v144, %v162
    %v164 = vsel %vm114, %v163, 0.0
    %165 = vadd.xlane.f32.xlu0 %v164
    %v166 = vpop.xlane.xlu0 %165
    %v167 = vadd.f32 %v161, %v166
    %168 = vst.msk [vmem:[#allocation6] sm:$0xff] %vm151, %v167
    %v169 = vld [vmem:[#allocation7] sm:$0xff]
    %v170 = vmul.f32 %v125, %v125
    %v171 = vmul.f32 %v169, %v170
    %v172 = vmul.f32 %v136, %v136
    %v173 = vsel %vm114, %v172, 0.0
    %174 = vadd.xlane.f32.xlu0 %v173
    %v175 = vpop.xlane.xlu0 %174
    %v176 = vadd.f32 %v171, %v175
    %177 = vst.msk [vmem:[#allocation7] sm:$0xff] %vm151, %v176
    %178 = vst.msk [vmem:[#allocation2] sm:$0xff] %vm151, %v118
    %179 = vst.msk [vmem:[#allocation3] sm:$0xff] %vm151, %v122
    // Predicated region
    $region26: #{tpu_custom_call.1} parent=1 // pred_check
      %p180 = pneg %p92
    $region27: #{tpu_custom_call.1} parent=1 // pred_check_branch
      %182 = sbr.rel (%p180) target = $region29
    $region28: #{tpu_custom_call.1} parent=1 // pred_region
      %v183 = vld [vmem:[#allocation6] sm:$0xff]
      %v184 = vld [vmem:[#allocation5] sm:$0xff]
      %v185 = vrcp.pop %v184
      %v186 = vmul.f32 %v184, %v185
      %v187 = vsub.f32 1.0, %v186
      %v188 = vmul.f32 %v185, %v187
      %v189 = vadd.f32 %v185, %v188
      %vm190 = vweird.f32 %v184
      %vm191 = vweird.f32 %v185
      %vm192 = vmor %vm190, %vm191
      %v193 = vsel %vm192, %v185, %v189
      %v194 = vand.u32 2147483647, %v184
      %vm195 = vcmp.eq.f32.partialorder %v194, 8.507059e+37
      %v196 = vand.u32 %v184, 2147483648
      %v197 = vor.u32 1.1754944e-38, %v196
      %v198 = vsel %vm195, %v197, %v193
      %v199 = vmul.f32 %v183, %v198
      %v200 = vld [vmem:[#allocation2] sm:$0xff]
      %v201 = vld [vmem:[#allocation3] sm:$0xff]
      %v202 = vsub.f32 %v200, %v201
      %v203 = vadd.f32 %v199, %v202
      %v204 = vld [vmem:[#allocation4] sm:$0xff]
      %v205 = vlog2.pop %v204
      %v206 = vmul.f32 %v205, 0.6931472
      %v207 = vadd.f32 %v203, %v206
      %v208 = vlog2.pop %v184
      %v209 = vmul.f32 %v208, 0.6931472
      %v210 = vsub.f32 %v207, %v209
      %v211 = vmul.f32 %v200, 2.0
      %v212 = vld [vmem:[#allocation7] sm:$0xff]
      %v213 = vlog2.pop %v212
      %v214 = vmul.f32 %v213, 0.6931472
      %v215 = vadd.f32 %v211, %v214
      %v216 = vld [vmem:[%s87] sm:$0xff]
      %v217 = vsub.f32 %v215, %v216
      %v218 = vlaneseq
      %v219 = vshrl.u32 %v218, 7
      %s220 = sadd.s32 0, 0
      %s221 = smul.u32 %s220, 8
      %v222 = vstv %s221
      %v223 = vadd.s32 %v222, %v219
      %vm224 = vcmp.lt.s32.totalorder %v223, 8
      %v225 = vsel %vm224, %v210, 0.0
      %v226 = vsel %vm151, %v225, 0.0
      %227 = vadd.xlane.f32.xlu0 %v226
      %v228 = vpop.xlane.xlu0 %227
      %v229 = vrot.slane %v228, 4
      %v230 = vadd.f32 %v228, %v229
      %v231 = vrot.slane %v230, 2
      %v232 = vadd.f32 %v230, %v231
      %v233 = vrot.slane %v232, 1
      %v234 = vadd.f32 %v232, %v233
      %s235 = vtos %v234
      %v236 = vsel %vm224, %v217, 0.0
      %v237 = vsel %vm151, %v236, 0.0
      %238 = vadd.xlane.f32.xlu0 %v237
      %v239 = vpop.xlane.xlu0 %238
      %v240 = vrot.slane %v239, 4
      %v241 = vadd.f32 %v239, %v240
      %v242 = vrot.slane %v241, 2
      %v243 = vadd.f32 %v241, %v242
      %v244 = vrot.slane %v243, 1
      %v245 = vadd.f32 %v243, %v244
      %s246 = vtos %v245
      %s247 = smul.f32 %s235, 1.2
      %s248 = smul.f32 %s246, 0.7
      %s249 = sadd.f32 %s247, %s248
      %s250 = smul.f32 %s249, 0.125
      %v251 = vld [vmem:[#allocation11] sm:$0xff]
      %v252 = vstv %s250
      %v253 = vadd.f32 %v251, %v252
      %254 = vst [vmem:[#allocation11] sm:$0xff] %v253
    $region29: #{tpu_custom_call.1} parent=1 // pred_fallthru
      _
    // Predicated region
    $region30: #{tpu_custom_call.1} parent=1 // pred_check
      _
    $region31: #{tpu_custom_call.1} parent=1 // pred_check_branch
      %256 = sbr.rel (0) target = $region33
    $region32: #{tpu_custom_call.1} parent=1 // pred_region
      %258 = vsyncadd [#allocation10], 0
      %s260 = sshll.u32 [#allocation11], 4
      %s261 = int_to_ptr.vmem [resolvable:$true] %s260
      %s262 = sshll.u32 %s3, 4
      %s263 = int_to_ptr.hbm [resolvable:$true] %s262
      %265 = dma.vmem_to_hbm [thread:$0]  %s261, 128, %s263, [#allocation10]
    $region33: #{tpu_custom_call.1} parent=1 // pred_fallthru
      _
    // Predicated region
    $region34: #{tpu_custom_call.1} parent=1 // pred_check
      _
    $region35: #{tpu_custom_call.1} parent=1 // pred_check_branch
      %267 = sbr.rel (0) target = $region37
    $region36: #{tpu_custom_call.1} parent=1 // pred_region
      %269 = dma.done [#allocation10], 128
    $region37: #{tpu_custom_call.1} parent=1 // pred_fallthru
      _
    %270 = vsyncpa [#allocation9], 1
    %271 = vsyncpa [#allocation10], 1

</llo_original>
